<compile_context>
chip_gen: v5e
topology: v5e:2x2
jax: 0.10.0
libtpu: 0.0.40
codegen_flags: <defaults>
</compile_context>

<pallas_src>
import functools

import jax
import jax.numpy as jnp
from jax.experimental import pallas as pl
from jax.experimental.pallas import tpu as pltpu

EPS = 1e-5  # PyTorch InstanceNorm2d default


# ---------------------------------------------------------------------------
# pltpu.roll direction probe (defensive: pins the hardware rotate convention
# once so the reflection edge fixes below are correct on any backend revision).
# ---------------------------------------------------------------------------
def _roll_probe_kernel(x_ref, o_ref):
    o_ref[...] = pltpu.roll(x_ref[...], 1, axis=0)


@functools.lru_cache(maxsize=1)
def _roll_sign() -> int:
    """Returns s such that pltpu.roll(x, s*k, axis) == np.roll(x, k, axis)."""
    x = jnp.arange(8 * 128, dtype=jnp.float32).reshape(8, 128)
    y = pl.pallas_call(
        _roll_probe_kernel,
        out_shape=jax.ShapeDtypeStruct((8, 128), jnp.float32),
    )(x)
    return 1 if float(jax.device_get(y)[1, 0]) == 0.0 else -1


# ---------------------------------------------------------------------------
# Kernel
# ---------------------------------------------------------------------------
def _resblock_kernel(x_ref, w1_ref, b1_ref, w2_ref, b2_ref, o_ref, *, roll_sign):
    # x_ref: (1, H, W, Cp) f32;  w*_ref: (3, 3*Cp, Cp) bf16;  b*_ref: (1, Cp) f32
    _, H, W, Cp = x_ref.shape
    HW = H * W

    x2 = x_ref[0].reshape(HW, Cp)                        # (HW, Cp) f32, free view

    # Flat-row-index masks used for the reflection-pad edge fixes.
    r = jax.lax.broadcasted_iota(jnp.int32, (HW, 1), 0)
    at_w_first = (r % W) == 0
    at_w_last = (r % W) == (W - 1)
    at_h_first = r < W
    at_h_last = r >= (H - 1) * W

    def nroll(t, k):
        # np.roll(t, k, axis=0), independent of the hardware rotate convention.
        return pltpu.roll(t, (roll_sign * k) % t.shape[0], axis=0)

    def conv3x3_refl(t, w_ref, b_ref):
        """3x3 conv with reflection pad 1.  t: (HW, Cp) f32 -> (HW, Cp) f32."""
        # dx = -1 / +1 neighbours (reflection at the left/right image edges).
        tm = nroll(t, 1)        # value at (h, w-1)   [wrong only at w == 0]
        tp = nroll(t, -1)       # value at (h, w+1)   [wrong only at w == W-1]
        left = jnp.where(at_w_first, tp, tm)   # reflect: w-1 -> w=1 at the edge
        right = jnp.where(at_w_last, tm, tp)   # reflect: w+1 -> w=W-2 at the edge
        # (HW, 3*Cp) slab; kernel-column order [x-1, x, x+1] matches the
        # (3, 3*Cp, Cp) weight layout produced by the wrapper.
        slab = jnp.concatenate([left, t, right], axis=1)
        # dy = -1 / +1 neighbours: rolls by +-W (whole sublane-tile moves).
        sm = nroll(slab, W)     # row h-1   [wrong only at h == 0]
        sp = nroll(slab, -W)    # row h+1   [wrong only at h == H-1]
        up = jnp.where(at_h_first, sp, sm)
        down = jnp.where(at_h_last, sm, sp)
        # Three K=3*Cp bf16 matmuls with f32 accumulation on the MXU.
        acc = jnp.dot(up.astype(jnp.bfloat16), w_ref[0],
                      preferred_element_type=jnp.float32)
        acc += jnp.dot(slab.astype(jnp.bfloat16), w_ref[1],
                       preferred_element_type=jnp.float32)
        acc += jnp.dot(down.astype(jnp.bfloat16), w_ref[2],
                       preferred_element_type=jnp.float32)
        return acc + b_ref[...]

    def instance_norm(t):
        # Per-channel stats over the spatial axis; biased variance, no affine.
        inv_n = 1.0 / HW
        s = jnp.sum(t, axis=0, keepdims=True)
        ss = jnp.sum(t * t, axis=0, keepdims=True)
        mean = s * inv_n
        var = ss * inv_n - mean * mean
        return (t - mean) * jax.lax.rsqrt(var + EPS)

    h = conv3x3_refl(x2, w1_ref, b1_ref)
    h = jnp.maximum(instance_norm(h), 0.0)               # InstanceNorm + ReLU
    h2 = instance_norm(conv3x3_refl(h, w2_ref, b2_ref))
    o_ref[0] = (x2 + h2).reshape(H, W, Cp)                # residual / skip add


# ---------------------------------------------------------------------------
# Wrapper
# ---------------------------------------------------------------------------
def _round_up(v, m):
    return ((v + m - 1) // m) * m


def _prep_weight(w, c_pad):
    # PyTorch OIHW (Cout, Cin, 3, 3) -> (3, 3*Cp, Cp) bf16, (kw, Cin) collapsed.
    cout, cin = w.shape[0], w.shape[1]
    wk = jnp.transpose(w, (2, 3, 1, 0)).astype(jnp.float32)  # (kh, kw, Cin, Cout)
    wk = jnp.pad(wk, ((0, 0), (0, 0), (0, c_pad - cin), (0, c_pad - cout)))
    return wk.reshape(3, 3 * c_pad, c_pad).astype(jnp.bfloat16)


def _prep_bias(b, c_pad):
    return jnp.pad(b.astype(jnp.float32), (0, c_pad - b.shape[0])).reshape(1, c_pad)


def _vmem_limit_bytes(H, W, c_pad):
    hw = H * W
    est = (
        4 * hw * c_pad * 4            # double-buffered f32 image in/out blocks
        + 4 * 9 * c_pad * c_pad * 2   # two resident bf16 weight slabs (margin x2)
        + 12 * hw * c_pad * 4         # f32 shift / slab / accumulator temporaries
    )
    return int(min(max(2 * est, 32 * 1024 * 1024), 64 * 1024 * 1024))


@functools.partial(jax.jit, static_argnames=("roll_sign",))
def _residual_block_impl(x_nchw, w1, b1, w2, b2, *, roll_sign):
    N, C, H, W = x_nchw.shape
    assert H >= 2 and W >= 2, "reflection pad of 1 needs H, W >= 2"
    c_pad = max(_round_up(C, 128), 128)   # fill the 128-wide lane axis

    x = jnp.transpose(x_nchw, (0, 2, 3, 1)).astype(jnp.float32)       # NHWC
    x = jnp.pad(x, ((0, 0), (0, 0), (0, 0), (0, c_pad - C)))

    w1k, w2k = _prep_weight(w1, c_pad), _prep_weight(w2, c_pad)
    b1k, b2k = _prep_bias(b1, c_pad), _prep_bias(b2, c_pad)

    kernel = functools.partial(_resblock_kernel, roll_sign=roll_sign)
    out = pl.pallas_call(
        kernel,
        out_shape=jax.ShapeDtypeStruct((N, H, W, c_pad), jnp.float32),
        grid_spec=pltpu.PrefetchScalarGridSpec(
            num_scalar_prefetch=0,
            grid=(N,),
            in_specs=[
                pl.BlockSpec((1, H, W, c_pad), lambda n: (n, 0, 0, 0)),
                pl.BlockSpec((3, 3 * c_pad, c_pad), lambda n: (0, 0, 0)),
                pl.BlockSpec((1, c_pad), lambda n: (0, 0)),
                pl.BlockSpec((3, 3 * c_pad, c_pad), lambda n: (0, 0, 0)),
                pl.BlockSpec((1, c_pad), lambda n: (0, 0)),
            ],
            out_specs=pl.BlockSpec((1, H, W, c_pad), lambda n: (n, 0, 0, 0)),
        ),
        compiler_params=pltpu.CompilerParams(
            dimension_semantics=("parallel",),
            vmem_limit_bytes=_vmem_limit_bytes(H, W, c_pad),
        ),
    )(x, w1k, b1k, w2k, b2k)

    return jnp.transpose(out[..., :C], (0, 3, 1, 2))                  # NCHW


def residual_block(x_nchw, w1, b1, w2, b2):
    """x_nchw: (N, C, H, W) f32.  w*: (C, C, 3, 3) PyTorch OIHW.  b*: (C,)."""
    return _residual_block_impl(x_nchw, w1, b1, w2, b2, roll_sign=_roll_sign())


# ---------------------------------------------------------------------------
# Pure-JAX reference (mirrors the PyTorch module, NCHW)
# ---------------------------------------------------------------------------
def _reference(x, w1, b1, w2, b2, *, quantize=False):
    """quantize=True rounds conv operands to bf16 (as the kernel does), so the
    comparison isolates kernel bugs from expected bf16 rounding."""
    q = (lambda t: t.astype(jnp.bfloat16).astype(jnp.float32)) if quantize else (lambda t: t)

    def sub(t, w, b):
        tp = jnp.pad(t, ((0, 0), (0, 0), (1, 1), (1, 1)), mode="reflect")
        y = jax.lax.conv_general_dilated(
            q(tp), q(w), window_strides=(1, 1), padding="VALID",
            dimension_numbers=("NCHW", "OIHW", "NCHW"),
            precision=jax.lax.Precision.HIGHEST,
        ) + b.reshape(1, -1, 1, 1)
        mean = jnp.mean(y, axis=(2, 3), keepdims=True)
        var = jnp.mean((y - mean) ** 2, axis=(2, 3), keepdims=True)
        return (y - mean) * jax.lax.rsqrt(var + EPS)

    h = jax.nn.relu(sub(x, w1, b1))
    return x + sub(h, w2, b2)


if __name__ == "__main__":
    N, C, H, W = 2, 4, 16, 16

    key = jax.random.PRNGKey(0)
    kx, kw1, kb1, kw2, kb2 = jax.random.split(key, 5)

    x = jax.random.normal(kx, (N, C, H, W), dtype=jnp.float32)
    w1 = 0.1 * jax.random.normal(kw1, (C, C, 3, 3), dtype=jnp.float32)
    b1 = 0.1 * jax.random.normal(kb1, (C,), dtype=jnp.float32)
    w2 = 0.1 * jax.random.normal(kw2, (C, C, 3, 3), dtype=jnp.float32)
    b2 = 0.1 * jax.random.normal(kb2, (C,), dtype=jnp.float32)

    out = jax.block_until_ready(residual_block(x, w1, b1, w2, b2))
    assert out.shape == (N, C, H, W)

    # Tight check vs a reference with the same bf16 operand rounding.
    ref_q = jax.block_until_ready(_reference(x, w1, b1, w2, b2, quantize=True))
    err_q = float(jnp.max(jnp.abs(out - ref_q)))
    # Coarse check vs the pure-f32 reference (bf16 rounding must stay small).
    ref_f = jax.block_until_ready(_reference(x, w1, b1, w2, b2, quantize=False))
    err_f = float(jnp.max(jnp.abs(out - ref_f)))

    assert err_q < 2e-2, f"kernel mismatch vs bf16-quantized reference: {err_q}"
    assert err_f < 2.5e-1, f"kernel drift vs f32 reference too large: {err_f}"

    print("KERNEL_OK")
</pallas_src>

<mosaic_0001>
module attributes {stable_mosaic.version = 11 : i64} {
  func.func @_roll_probe_kernel(%arg0: memref<8x128xf32, #tpu.memory_space<vmem>>, %arg1: memref<8x128xf32, #tpu.memory_space<vmem>>) attributes {dimension_semantics = [], scalar_prefetch = 0 : i64, scratch_operands = 0 : i64, tpu.core_type = #tpu.core_type<tc>} {
    %c0 = arith.constant 0 : index
    %c0_0 = arith.constant 0 : index
    %0 = vector.load %arg0[%c0, %c0_0] : memref<8x128xf32, #tpu.memory_space<vmem>>, vector<8x128xf32>
    %c1_i32 = arith.constant 1 : i32
    %1 = tpu.dynamic_rotate %0 by %c1_i32 dim 0 : vector<8x128xf32>, i32 -> vector<8x128xf32>
    %c0_1 = arith.constant 0 : index
    %c0_2 = arith.constant 0 : index
    %2 = vector.load %arg1[%c0_1, %c0_2] : memref<8x128xf32, #tpu.memory_space<vmem>>, vector<8x128xf32>
    tpu.vector_store %arg1[%c0_1, %c0_2], %1 {strides = array<i32>} : memref<8x128xf32, #tpu.memory_space<vmem>>, vector<8x128xf32>,
    return
  }
}

</mosaic_0001>

<llo_original>
// kernel: tpu_custom_call.1
$region0: #{tpu_custom_call.1}
  #allocation0 [shape = 'u32[]', space=smem, size = 0x4, offset = 0x4, fixed_abs, tag = 'smem constant byte address 0x4 - core index']
  #allocation1 [shape = 'u32[72,128]{1,0:T(1,128)}', space=vmem, size = 0x9000, scoped, tag = 'internal scratch']
  %s0 = inlined_call_operand.hbm [shape: f32[8,128], index: 0, kind: input, shape index: {}]
  %s1 = inlined_call_operand.hbm [shape: f32[8,128], index: 1, kind: output, shape index: {}]
  %s2 = sld [smem:[#allocation0]]
  $region18: #{tpu_custom_call.1} parent=0
    _
  %s4 = ssub.s32 1, %s2
  %s5 = scalar_select 0, %s4, %s2
  $region1: #{tpu_custom_call.1} parent=0
    #allocation2 [shape = 'u8[4096]{0}', space=vmem, size = 0x1000, scoped, tag = 'input window, operand 0, single buffered']
    #allocation3 [shape = 's32[1]{0}', space=sflag, size = 0x4, scoped, tag = 'scoped memory for tpu_custom_call.1']
    #allocation4 [shape = 's32[1]{0}', space=sflag, size = 0x4, scoped, tag = 'scoped memory for tpu_custom_call.1']
    #allocation5 [shape = 'u8[4096]{0}', space=vmem, size = 0x1000, scoped, tag = 'output window, operand 0, single buffered']
    %6 = vsyncpa [#allocation3], 0
    %7 = vsyncpa [#allocation4], 0
    // Predicated region
    $region2: #{tpu_custom_call.1} parent=1 // pred_check
      _
    $region3: #{tpu_custom_call.1} parent=1 // pred_check_branch
      %9 = sbr.rel (0) target = $region5
    $region4: #{tpu_custom_call.1} parent=1 // pred_region
      %11 = vsyncadd [#allocation3], 0
      %s13 = sshll.u32 %s0, 4
      %s14 = int_to_ptr.hbm [resolvable:$true] %s13
      %s15 = sshll.u32 [#allocation2], 4
      %s16 = int_to_ptr.vmem [resolvable:$true] %s15
      %18 = dma.hbm_to_vmem [thread:$0]  %s14, 128, %s16, [#allocation3]
    $region5: #{tpu_custom_call.1} parent=1 // pred_fallthru
      _
    // Predicated region
    $region6: #{tpu_custom_call.1} parent=1 // pred_check
      _
    $region7: #{tpu_custom_call.1} parent=1 // pred_check_branch
      %20 = sbr.rel (0) target = $region9
    $region8: #{tpu_custom_call.1} parent=1 // pred_region
      %22 = dma.done [#allocation3], 128
    $region9: #{tpu_custom_call.1} parent=1 // pred_fallthru
      _
    %v23 = vld [vmem:[#allocation2] sm:$0xff]
    %v24 = vrot.slane %v23, 7
    %25 = vst [vmem:[#allocation5] sm:$0xff] %v24
    // Predicated region
    $region10: #{tpu_custom_call.1} parent=1 // pred_check
      _
    $region11: #{tpu_custom_call.1} parent=1 // pred_check_branch
      %27 = sbr.rel (0) target = $region13
    $region12: #{tpu_custom_call.1} parent=1 // pred_region
      %29 = vsyncadd [#allocation4], 0
      %s31 = sshll.u32 [#allocation5], 4
      %s32 = int_to_ptr.vmem [resolvable:$true] %s31
      %s33 = sshll.u32 %s1, 4
      %s34 = int_to_ptr.hbm [resolvable:$true] %s33
      %36 = dma.vmem_to_hbm [thread:$0]  %s32, 128, %s34, [#allocation4]
    $region13: #{tpu_custom_call.1} parent=1 // pred_fallthru
      _
    // Predicated region
    $region14: #{tpu_custom_call.1} parent=1 // pred_check
      _
    $region15: #{tpu_custom_call.1} parent=1 // pred_check_branch
      %38 = sbr.rel (0) target = $region17
    $region16: #{tpu_custom_call.1} parent=1 // pred_region
      %40 = dma.done [#allocation4], 128
    $region17: #{tpu_custom_call.1} parent=1 // pred_fallthru
      _
    %41 = vsyncpa [#allocation3], 1
    %42 = vsyncpa [#allocation4], 1

</llo_original>
